<compile_context>
chip_gen: v7x
topology: tpu7x:2x2x1
jax: 0.10.0
libtpu: 0.0.40
codegen_flags: <defaults>
</compile_context>

<pallas_src>
import functools

import jax
import jax.numpy as jnp
from jax.experimental import pallas as pl
from jax.experimental.pallas import tpu as pltpu

KSIZE = 3
PAD = 1


def _conv3x3_kernel(x_ref, w_ref, o_ref, *, N, C, H, W):
    # x_ref : (C*N, H*W)  flat images, channel-major rows (row = c*N + n), VMEM
    # w_ref : (C*N, 9)    per-row 3x3 weights (row c*N + n holds weight[:, c]), VMEM
    # o_ref : (N, H*W)    dense flat outputs, VMEM
    HW = H * W
    NC = C * N

    xv = x_ref[...].astype(jnp.float32)   # single load: 2 vregs at (8, 256)
    wv = w_ref[...].astype(jnp.float32)   # (NC, 9), one padded vreg

    # Per-lane image coordinates of each *output* pixel (same for every row).
    lane = jax.lax.broadcasted_iota(jnp.int32, (NC, HW), 1)
    col = lane % W
    # Validity masks per vertical / horizontal tap offset.  A tap (dy, dx)
    # reads input pixel (y+dy, x+dx); it contributes iff that pixel is inside
    # the image (zero padding).  Any lane that pltpu.roll wraps around is
    # out-of-bounds in image coordinates, so these masks also zero all wrapped
    # lanes -- no padded scratch needed.
    row_ok = {-1: lane >= W, 0: None, 1: lane < (H - 1) * W}
    col_ok = {-1: col >= 1, 0: None, 1: col < (W - 1)}

    acc = jnp.zeros((NC, HW), jnp.float32)
    for dy in (-1, 0, 1):
        for dx in (-1, 0, 1):
            t = (dy + 1) * KSIZE + (dx + 1)      # tap index 0..8
            s = dy * W + dx                      # flat shift of this tap
            # rolled[i] = xv[(i + s) mod HW]  (XLU lane rotation, static shift)
            tap = xv if s == 0 else pltpu.roll(xv, shift=(-s) % HW, axis=1)
            m = None
            for mm in (row_ok[dy], col_ok[dx]):
                if mm is not None:
                    m = mm if m is None else (m & mm)
            if m is not None:
                tap = jnp.where(m, tap, 0.0)
            # Per-channel weight as an (NC, 1) column, broadcast along lanes.
            acc = acc + tap * wv[:, t:t + 1]

    # Channel reduction: rows are channel-major, so each channel block is a
    # contiguous static sublane slice of size (N, HW).
    out = acc[0:N, :]
    for c in range(1, C):
        out = out + acc[c * N:(c + 1) * N, :]

    o_ref[...] = out.astype(o_ref.dtype)         # single lane-dense store


def conv_forward(x, weight):
    """x: (N, C, H, W), weight: (1, C, 3, 3) -> (N, 1, H, W). No bias."""
    N, C, H, W = x.shape
    assert weight.shape == (1, C, KSIZE, KSIZE)
    assert KSIZE == 3 and PAD == 1, "flat-shift taps assume 3x3 / pad=1"
    assert H >= 2 and W >= 2

    HW = H * W
    NC = N * C

    # Layout plumbing (tiny): channel-major rows so the in-kernel channel
    # reduction is contiguous sublane slices; weights repeated per batch row.
    x_rows = jnp.transpose(x, (1, 0, 2, 3)).reshape(NC, HW)
    w_rows = jnp.repeat(weight.reshape(C, KSIZE * KSIZE), N, axis=0)  # (NC, 9)

    kernel = functools.partial(_conv3x3_kernel, N=N, C=C, H=H, W=W)

    out_flat = pl.pallas_call(
        kernel,
        out_shape=jax.ShapeDtypeStruct((N, HW), x.dtype),
        grid_spec=pltpu.PrefetchScalarGridSpec(
            num_scalar_prefetch=0,
            grid=(1,),
            in_specs=[
                pl.BlockSpec((NC, HW), lambda i: (0, 0)),
                pl.BlockSpec((NC, KSIZE * KSIZE), lambda i: (0, 0)),
            ],
            out_specs=pl.BlockSpec((N, HW), lambda i: (0, 0)),
        ),
        compiler_params=pltpu.CompilerParams(
            dimension_semantics=("arbitrary",),
        ),
    )(x_rows, w_rows)

    # Free reshape (contiguous), no slice/compaction pass over the output.
    return out_flat.reshape(N, 1, H, W)


if __name__ == "__main__":
    key = jax.random.PRNGKey(0)
    kx, kw = jax.random.split(key)

    # Small shapes consistent with the module: N=2, C=4, H=W=16.
    N, C, H, W = 2, 4, 16, 16
    x = jax.random.normal(kx, (N, C, H, W), dtype=jnp.float32)
    # Deterministic synthetic weight init (no checkpoint): shape (1, C, 3, 3).
    fan_in = C * KSIZE * KSIZE
    bound = 1.0 / (fan_in ** 0.5)
    weight = jax.random.uniform(
        kw, (1, C, KSIZE, KSIZE), dtype=jnp.float32, minval=-bound, maxval=bound
    )

    out = conv_forward(x, weight)
    out = jax.block_until_ready(out)

    # Reference check against XLA conv (NCHW, padding=1, stride=1, no bias).
    ref = jax.lax.conv_general_dilated(
        x, weight, window_strides=(1, 1), padding=((PAD, PAD), (PAD, PAD)),
        dimension_numbers=("NCHW", "OIHW", "NCHW"),
    )
    assert out.shape == (N, 1, H, W)
    assert jnp.allclose(out, ref, atol=1e-5, rtol=1e-5)

    print("KERNEL_OK")
</pallas_src>

<mosaic_0001>
module attributes {stable_mosaic.version = 11 : i64} {
  func.func @_conv3x3_kernel(%arg0: i32, %arg1: memref<8x256xf32, #tpu.memory_space<vmem>>, %arg2: memref<8x9xf32, #tpu.memory_space<vmem>>, %arg3: memref<2x256xf32, #tpu.memory_space<vmem>>) attributes {dimension_semantics = [#tpu.dimension_semantics<arbitrary>], iteration_bounds = array<i64: 1>, scalar_prefetch = 0 : i64, scratch_operands = 0 : i64, tpu.core_type = #tpu.core_type<tc>, window_params = [{pipeline_mode = #tpu.pipeline_mode<synchronous>, transform_indices = @transform_0, window_bounds = array<i64: 8, 256>}, {pipeline_mode = #tpu.pipeline_mode<synchronous>, transform_indices = @transform_1, window_bounds = array<i64: 8, 9>}, {pipeline_mode = #tpu.pipeline_mode<synchronous>, transform_indices = @transform_2, window_bounds = array<i64: 2, 256>}]} {
    %c0 = arith.constant 0 : index
    %c0_0 = arith.constant 0 : index
    %0 = vector.load %arg1[%c0, %c0_0] : memref<8x256xf32, #tpu.memory_space<vmem>>, vector<8x256xf32>
    %c0_1 = arith.constant 0 : index
    %c0_2 = arith.constant 0 : index
    %1 = vector.load %arg2[%c0_1, %c0_2] : memref<8x9xf32, #tpu.memory_space<vmem>>, vector<8x9xf32>
    %2 = tpu.iota {dimensions = array<i32: 1>} : vector<8x256xi32>
    %c16_i32 = arith.constant 16 : i32
    %c0_i32 = arith.constant 0 : i32
    %3 = arith.cmpi eq, %c16_i32, %c0_i32 : i32
    %c1_i32 = arith.constant 1 : i32
    %4 = arith.select %3, %c1_i32, %c16_i32 : i32
    %5 = vector.broadcast %4 : i32 to vector<8x256xi32>
    %6 = arith.remsi %2, %5 : vector<8x256xi32>
    %c0_i32_3 = arith.constant 0 : i32
    %7 = vector.broadcast %c0_i32_3 : i32 to vector<8x256xi32>
    %8 = arith.cmpi ne, %6, %7 : vector<8x256xi32>
    %c0_i32_4 = arith.constant 0 : i32
    %9 = vector.broadcast %c0_i32_4 : i32 to vector<8x256xi32>
    %10 = arith.cmpi slt, %6, %9 : vector<8x256xi32>
    %c0_i32_5 = arith.constant 0 : i32
    %11 = arith.cmpi slt, %4, %c0_i32_5 : i32
    %12 = vector.broadcast %11 : i1 to vector<8x256xi1>
    %13 = vector.broadcast %12 : vector<8x256xi1> to vector<8x256xi1>
    %14 = arith.xori %10, %13 : vector<8x256xi1>
    %15 = arith.andi %14, %8 : vector<8x256xi1>
    %16 = vector.broadcast %4 : i32 to vector<8x256xi32>
    %17 = arith.addi %6, %16 : vector<8x256xi32>
    %18 = arith.select %15, %17, %6 : vector<8x256xi1>, vector<8x256xi32>
    %c16_i32_6 = arith.constant 16 : i32
    %19 = vector.broadcast %c16_i32_6 : i32 to vector<8x256xi32>
    %20 = arith.cmpi sge, %2, %19 : vector<8x256xi32>
    %c240_i32 = arith.constant 240 : i32
    %21 = vector.broadcast %c240_i32 : i32 to vector<8x256xi32>
    %22 = arith.cmpi slt, %2, %21 : vector<8x256xi32>
    %c1_i32_7 = arith.constant 1 : i32
    %23 = vector.broadcast %c1_i32_7 : i32 to vector<8x256xi32>
    %24 = arith.cmpi sge, %18, %23 : vector<8x256xi32>
    %c15_i32 = arith.constant 15 : i32
    %25 = vector.broadcast %c15_i32 : i32 to vector<8x256xi32>
    %26 = arith.cmpi slt, %18, %25 : vector<8x256xi32>
    %cst = arith.constant 0.000000e+00 : f32
    %27 = vector.broadcast %cst : f32 to vector<8x256xf32>
    %c17_i32 = arith.constant 17 : i32
    %28 = tpu.dynamic_rotate %0 by %c17_i32 dim 1 : vector<8x256xf32>, i32 -> vector<8x256xf32>
    %29 = arith.andi %20, %24 : vector<8x256xi1>
    %cst_8 = arith.constant 0.000000e+00 : f32
    %30 = vector.broadcast %cst_8 : f32 to vector<8x256xf32>
    %31 = arith.select %29, %28, %30 : vector<8x256xi1>, vector<8x256xf32>
    %32 = vector.extract_strided_slice %1 {offsets = [0, 0], sizes = [8, 1], strides = [1, 1]} : vector<8x9xf32> to vector<8x1xf32>
    %33 = vector.broadcast %32 : vector<8x1xf32> to vector<8x256xf32>
    %34 = arith.mulf %31, %33 : vector<8x256xf32>
    %35 = arith.addf %27, %34 : vector<8x256xf32>
    %c16_i32_9 = arith.constant 16 : i32
    %36 = tpu.dynamic_rotate %0 by %c16_i32_9 dim 1 : vector<8x256xf32>, i32 -> vector<8x256xf32>
    %cst_10 = arith.constant 0.000000e+00 : f32
    %37 = vector.broadcast %cst_10 : f32 to vector<8x256xf32>
    %38 = arith.select %20, %36, %37 : vector<8x256xi1>, vector<8x256xf32>
    %39 = vector.extract_strided_slice %1 {offsets = [0, 1], sizes = [8, 1], strides = [1, 1]} : vector<8x9xf32> to vector<8x1xf32>
    %40 = vector.broadcast %39 : vector<8x1xf32> to vector<8x256xf32>
    %41 = arith.mulf %38, %40 : vector<8x256xf32>
    %42 = arith.addf %35, %41 : vector<8x256xf32>
    %c15_i32_11 = arith.constant 15 : i32
    %43 = tpu.dynamic_rotate %0 by %c15_i32_11 dim 1 : vector<8x256xf32>, i32 -> vector<8x256xf32>
    %44 = arith.andi %20, %26 : vector<8x256xi1>
    %cst_12 = arith.constant 0.000000e+00 : f32
    %45 = vector.broadcast %cst_12 : f32 to vector<8x256xf32>
    %46 = arith.select %44, %43, %45 : vector<8x256xi1>, vector<8x256xf32>
    %47 = vector.extract_strided_slice %1 {offsets = [0, 2], sizes = [8, 1], strides = [1, 1]} : vector<8x9xf32> to vector<8x1xf32>
    %48 = vector.broadcast %47 : vector<8x1xf32> to vector<8x256xf32>
    %49 = arith.mulf %46, %48 : vector<8x256xf32>
    %50 = arith.addf %42, %49 : vector<8x256xf32>
    %c1_i32_13 = arith.constant 1 : i32
    %51 = tpu.dynamic_rotate %0 by %c1_i32_13 dim 1 : vector<8x256xf32>, i32 -> vector<8x256xf32>
    %cst_14 = arith.constant 0.000000e+00 : f32
    %52 = vector.broadcast %cst_14 : f32 to vector<8x256xf32>
    %53 = arith.select %24, %51, %52 : vector<8x256xi1>, vector<8x256xf32>
    %54 = vector.extract_strided_slice %1 {offsets = [0, 3], sizes = [8, 1], strides = [1, 1]} : vector<8x9xf32> to vector<8x1xf32>
    %55 = vector.broadcast %54 : vector<8x1xf32> to vector<8x256xf32>
    %56 = arith.mulf %53, %55 : vector<8x256xf32>
    %57 = arith.addf %50, %56 : vector<8x256xf32>
    %58 = vector.extract_strided_slice %1 {offsets = [0, 4], sizes = [8, 1], strides = [1, 1]} : vector<8x9xf32> to vector<8x1xf32>
    %59 = vector.broadcast %58 : vector<8x1xf32> to vector<8x256xf32>
    %60 = arith.mulf %0, %59 : vector<8x256xf32>
    %61 = arith.addf %57, %60 : vector<8x256xf32>
    %c255_i32 = arith.constant 255 : i32
    %62 = tpu.dynamic_rotate %0 by %c255_i32 dim 1 : vector<8x256xf32>, i32 -> vector<8x256xf32>
    %cst_15 = arith.constant 0.000000e+00 : f32
    %63 = vector.broadcast %cst_15 : f32 to vector<8x256xf32>
    %64 = arith.select %26, %62, %63 : vector<8x256xi1>, vector<8x256xf32>
    %65 = vector.extract_strided_slice %1 {offsets = [0, 5], sizes = [8, 1], strides = [1, 1]} : vector<8x9xf32> to vector<8x1xf32>
    %66 = vector.broadcast %65 : vector<8x1xf32> to vector<8x256xf32>
    %67 = arith.mulf %64, %66 : vector<8x256xf32>
    %68 = arith.addf %61, %67 : vector<8x256xf32>
    %c241_i32 = arith.constant 241 : i32
    %69 = tpu.dynamic_rotate %0 by %c241_i32 dim 1 : vector<8x256xf32>, i32 -> vector<8x256xf32>
    %70 = arith.andi %22, %24 : vector<8x256xi1>
    %cst_16 = arith.constant 0.000000e+00 : f32
    %71 = vector.broadcast %cst_16 : f32 to vector<8x256xf32>
    %72 = arith.select %70, %69, %71 : vector<8x256xi1>, vector<8x256xf32>
    %73 = vector.extract_strided_slice %1 {offsets = [0, 6], sizes = [8, 1], strides = [1, 1]} : vector<8x9xf32> to vector<8x1xf32>
    %74 = vector.broadcast %73 : vector<8x1xf32> to vector<8x256xf32>
    %75 = arith.mulf %72, %74 : vector<8x256xf32>
    %76 = arith.addf %68, %75 : vector<8x256xf32>
    %c240_i32_17 = arith.constant 240 : i32
    %77 = tpu.dynamic_rotate %0 by %c240_i32_17 dim 1 : vector<8x256xf32>, i32 -> vector<8x256xf32>
    %cst_18 = arith.constant 0.000000e+00 : f32
    %78 = vector.broadcast %cst_18 : f32 to vector<8x256xf32>
    %79 = arith.select %22, %77, %78 : vector<8x256xi1>, vector<8x256xf32>
    %80 = vector.extract_strided_slice %1 {offsets = [0, 7], sizes = [8, 1], strides = [1, 1]} : vector<8x9xf32> to vector<8x1xf32>
    %81 = vector.broadcast %80 : vector<8x1xf32> to vector<8x256xf32>
    %82 = arith.mulf %79, %81 : vector<8x256xf32>
    %83 = arith.addf %76, %82 : vector<8x256xf32>
    %c239_i32 = arith.constant 239 : i32
    %84 = tpu.dynamic_rotate %0 by %c239_i32 dim 1 : vector<8x256xf32>, i32 -> vector<8x256xf32>
    %85 = arith.andi %22, %26 : vector<8x256xi1>
    %cst_19 = arith.constant 0.000000e+00 : f32
    %86 = vector.broadcast %cst_19 : f32 to vector<8x256xf32>
    %87 = arith.select %85, %84, %86 : vector<8x256xi1>, vector<8x256xf32>
    %88 = vector.extract_strided_slice %1 {offsets = [0, 8], sizes = [8, 1], strides = [1, 1]} : vector<8x9xf32> to vector<8x1xf32>
    %89 = vector.broadcast %88 : vector<8x1xf32> to vector<8x256xf32>
    %90 = arith.mulf %87, %89 : vector<8x256xf32>
    %91 = arith.addf %83, %90 : vector<8x256xf32>
    %92 = vector.extract_strided_slice %91 {offsets = [0, 0], sizes = [2, 256], strides = [1, 1]} : vector<8x256xf32> to vector<2x256xf32>
    %93 = vector.extract_strided_slice %91 {offsets = [2, 0], sizes = [2, 256], strides = [1, 1]} : vector<8x256xf32> to vector<2x256xf32>
    %94 = arith.addf %92, %93 : vector<2x256xf32>
    %95 = vector.extract_strided_slice %91 {offsets = [4, 0], sizes = [2, 256], strides = [1, 1]} : vector<8x256xf32> to vector<2x256xf32>
    %96 = arith.addf %94, %95 : vector<2x256xf32>
    %97 = vector.extract_strided_slice %91 {offsets = [6, 0], sizes = [2, 256], strides = [1, 1]} : vector<8x256xf32> to vector<2x256xf32>
    %98 = arith.addf %96, %97 : vector<2x256xf32>
    %c0_20 = arith.constant 0 : index
    %c0_21 = arith.constant 0 : index
    %99 = vector.load %arg3[%c0_20, %c0_21] : memref<2x256xf32, #tpu.memory_space<vmem>>, vector<2x256xf32>
    tpu.vector_store %arg3[%c0_20, %c0_21], %98 {strides = array<i32>} : memref<2x256xf32, #tpu.memory_space<vmem>>, vector<2x256xf32>,
    return
  }
  func.func @transform_0(%arg0: i32) -> (i32, i32) {
    %c0_i32 = arith.constant 0 : i32
    %c0_i32_0 = arith.constant 0 : i32
    %c0_i32_1 = arith.constant 0 : i32
    return %c0_i32, %c0_i32_0 : i32, i32
  }
  func.func @transform_1(%arg0: i32) -> (i32, i32) {
    %c0_i32 = arith.constant 0 : i32
    %c0_i32_0 = arith.constant 0 : i32
    %c0_i32_1 = arith.constant 0 : i32
    return %c0_i32, %c0_i32_0 : i32, i32
  }
  func.func @transform_2(%arg0: i32) -> (i32, i32) {
    %c0_i32 = arith.constant 0 : i32
    %c0_i32_0 = arith.constant 0 : i32
    %c0_i32_1 = arith.constant 0 : i32
    return %c0_i32, %c0_i32_0 : i32, i32
  }
}

</mosaic_0001>

<llo_original>
// kernel: tpu_custom_call.1
$region0: #{tpu_custom_call.1}
  #allocation0 [shape = 'u32[]', space=smem, size = 0x4, offset = 0x4, fixed_abs, tag = 'smem constant byte address 0x4 - core index']
  #allocation1 [shape = 'u32[144,128]{1,0:T(1,128)}', space=vmem, size = 0x12000, scoped, tag = 'internal scratch']
  %s0 = inlined_call_operand.hbm [shape: f32[8,256], index: 0, kind: input, shape index: {}]
  %s1 = inlined_call_operand.hbm [shape: f32[8,9], index: 1, kind: input, shape index: {}]
  %s2 = inlined_call_operand.hbm [shape: f32[2,256], index: 2, kind: output, shape index: {}]
  %s3 = sld [smem:[#allocation0]]
  $region26: #{tpu_custom_call.1} parent=0
    _
  %s5 = ssub.s32 1, %s3
  %s6 = scalar_select 0, %s5, %s3
  $region1: #{tpu_custom_call.1} parent=0
    #allocation2 [shape = 'u8[8192]{0}', space=vmem, size = 0x2000, scoped, tag = 'input window, operand 0, single buffered']
    #allocation3 [shape = 's32[1]{0}', space=sflag, size = 0x4, scoped, tag = 'scoped memory for tpu_custom_call.1']
    #allocation4 [shape = 's32[1]{0}', space=sflag, size = 0x4, scoped, tag = 'scoped memory for tpu_custom_call.1']
    #allocation5 [shape = 'u8[4096]{0}', space=vmem, size = 0x1000, scoped, tag = 'input window, operand 1, single buffered']
    #allocation6 [shape = 's32[1]{0}', space=sflag, size = 0x4, scoped, tag = 'scoped memory for tpu_custom_call.1']
    #allocation7 [shape = 'u8[2048]{0}', space=vmem, size = 0x800, scoped, tag = 'output window, operand 0, single buffered']
    %7 = vsyncpa [#allocation3], 0
    %8 = vsyncpa [#allocation6], 0
    %9 = vsyncpa [#allocation4], 0
    // Predicated region
    $region2: #{tpu_custom_call.1} parent=1 // pred_check
      _
    $region3: #{tpu_custom_call.1} parent=1 // pred_check_branch
      %11 = sbr.rel (0) target = $region5
    $region4: #{tpu_custom_call.1} parent=1 // pred_region
      %s13 = ssub.s32 256, 256
      %14 = vsyncadd [#allocation3], %s13
      %s16 = sshll.u32 [#allocation2], 4
      %s17 = int_to_ptr.vmem [resolvable:$true] %s16
      %19 = dma.hbm_to_vmem [thread:$0]  %s0, 256, %s17, [#allocation3]
    $region5: #{tpu_custom_call.1} parent=1 // pred_fallthru
      _
    // Predicated region
    $region6: #{tpu_custom_call.1} parent=1 // pred_check
      _
    $region7: #{tpu_custom_call.1} parent=1 // pred_check_branch
      %21 = sbr.rel (0) target = $region9
    $region8: #{tpu_custom_call.1} parent=1 // pred_region
      %s23 = ssub.s32 128, 128
      %24 = vsyncadd [#allocation6], %s23
      %s26 = sshll.u32 [#allocation5], 4
      %s27 = int_to_ptr.vmem [resolvable:$true] %s26
      %29 = dma.hbm_to_vmem [thread:$0]  %s1, 128, %s27, [#allocation6]
    $region9: #{tpu_custom_call.1} parent=1 // pred_fallthru
      _
    // Predicated region
    $region10: #{tpu_custom_call.1} parent=1 // pred_check
      _
    $region11: #{tpu_custom_call.1} parent=1 // pred_check_branch
      %31 = sbr.rel (0) target = $region13
    $region12: #{tpu_custom_call.1} parent=1 // pred_region
      %32 = dma.done [#allocation3], 256
    $region13: #{tpu_custom_call.1} parent=1 // pred_fallthru
      _
    // Predicated region
    $region14: #{tpu_custom_call.1} parent=1 // pred_check
      _
    $region15: #{tpu_custom_call.1} parent=1 // pred_check_branch
      %34 = sbr.rel (0) target = $region17
    $region16: #{tpu_custom_call.1} parent=1 // pred_region
      %35 = dma.done [#allocation6], 128
    $region17: #{tpu_custom_call.1} parent=1 // pred_fallthru
      _
    %v36 = vld [vmem:[#allocation2] sm:$0xff]
    %v37 = vld [vmem:[#allocation2 + $0x8] sm:$0xff]
    %v38 = vld [vmem:[#allocation5] sm:$0xff]
    %v39 = vlaneseq
    %v40 = vand.u32 %v39, 127
    %v41 = vadd.s32 %v40, 128
    %vm42 = vcmp.lt.s32.totalorder %v40, 0
    %v43 = vsub.s32 0, %v40
    %v44 = vsel %vm42, %v43, %v40
    %v45 = vshrl.u32 %v44, 4
    %v46 = vand.u32 %v44, 15
    %v47 = vsub.s32 0, %v46
    %v48 = vsel %vm42, %v47, %v46
    %vm49 = vcmp.lt.s32.totalorder %v41, 0
    %v50 = vsub.s32 0, %v41
    %v51 = vsel %vm49, %v50, %v41
    %v52 = vshrl.u32 %v51, 4
    %v53 = vand.u32 %v51, 15
    %v54 = vsub.s32 0, %v53
    %v55 = vsel %vm49, %v54, %v53
    %vm56 = vcmp.ne.s32.totalorder %v48, 0
    %vm57 = vcmp.ne.s32.totalorder %v55, 0
    %vm58 = vcmp.lt.s32.totalorder %v48, 0
    %vm59 = vcmp.lt.s32.totalorder %v55, 0
    %vm60 = vmand %vm58, %vm56
    %vm61 = vmand %vm59, %vm57
    %v62 = vadd.s32 %v48, 16
    %v63 = vadd.s32 %v55, 16
    %v64 = vsel %vm60, %v62, %v48
    %v65 = vsel %vm61, %v63, %v55
    %vm66 = vcmp.ge.s32.totalorder %v40, 16
    %vm67 = vcmp.ge.s32.totalorder %v41, 16
    %vm68 = vcmp.lt.s32.totalorder %v40, 240
    %vm69 = vcmp.lt.s32.totalorder %v41, 240
    %vm70 = vcmp.ge.s32.totalorder %v64, 1
    %vm71 = vcmp.ge.s32.totalorder %v65, 1
    %vm72 = vcmp.lt.s32.totalorder %v64, 15
    %vm73 = vcmp.lt.s32.totalorder %v65, 15
    %74 = vrot.lane.b32.xlu0 %v36, 17
    %v75 = vpop.permute.xlu0 %74
    %76 = vrot.lane.b32.xlu0 %v37, 17
    %v77 = vpop.permute.xlu0 %76
    %vm78 = vcmp.lt.s32.totalorder %v40, 17
    %v79 = vsel %vm78, %v75, %v77
    %v80 = vsel %vm78, %v77, %v75
    %vm81 = vmand %vm66, %vm70
    %vm82 = vmand %vm67, %vm71
    %v83 = vsel %vm81, %v80, 0.0
    %v84 = vsel %vm82, %v79, 0.0
    %86 = vset.pattern.permute.xlu0 0
    %87 = vperm.xlu0 %86, %v38
    %v88 = vpop.permute.xlu0 %87
    %v90 = vmul.f32 %v83, %v88
    %v91 = vmul.f32 %v84, %v88
    %v92 = vadd.f32 %v90, 0.0
    %v93 = vadd.f32 %v91, 0.0
    %94 = vrot.lane.b32.xlu0 %v36, 16
    %v95 = vpop.permute.xlu0 %94
    %96 = vrot.lane.b32.xlu0 %v37, 16
    %v97 = vpop.permute.xlu0 %96
    %vm98 = vcmp.lt.s32.totalorder %v40, 16
    %v99 = vsel %vm98, %v95, %v97
    %v100 = vsel %vm98, %v97, %v95
    %v101 = vsel %vm66, %v100, 0.0
    %v102 = vsel %vm67, %v99, 0.0
    %103 = vset.pattern.permute.xlu0 1
    %104 = vperm.xlu0 %103, %v38
    %v105 = vpop.permute.xlu0 %104
    %v107 = vmul.f32 %v101, %v105
    %v108 = vmul.f32 %v102, %v105
    %v109 = vadd.f32 %v92, %v107
    %v110 = vadd.f32 %v93, %v108
    %111 = vrot.lane.b32.xlu0 %v36, 15
    %v112 = vpop.permute.xlu0 %111
    %113 = vrot.lane.b32.xlu0 %v37, 15
    %v114 = vpop.permute.xlu0 %113
    %vm115 = vcmp.lt.s32.totalorder %v40, 15
    %v116 = vsel %vm115, %v112, %v114
    %v117 = vsel %vm115, %v114, %v112
    %vm118 = vmand %vm66, %vm72
    %vm119 = vmand %vm67, %vm73
    %v120 = vsel %vm118, %v117, 0.0
    %v121 = vsel %vm119, %v116, 0.0
    %122 = vset.pattern.permute.xlu0 2
    %123 = vperm.xlu0 %122, %v38
    %v124 = vpop.permute.xlu0 %123
    %v126 = vmul.f32 %v120, %v124
    %v127 = vmul.f32 %v121, %v124
    %v128 = vadd.f32 %v109, %v126
    %v129 = vadd.f32 %v110, %v127
    %130 = vrot.lane.b32.xlu0 %v36, 1
    %v131 = vpop.permute.xlu0 %130
    %132 = vrot.lane.b32.xlu0 %v37, 1
    %v133 = vpop.permute.xlu0 %132
    %vm134 = vcmp.lt.s32.totalorder %v40, 1
    %v135 = vsel %vm134, %v131, %v133
    %v136 = vsel %vm134, %v133, %v131
    %v137 = vsel %vm70, %v136, 0.0
    %v138 = vsel %vm71, %v135, 0.0
    %139 = vset.pattern.permute.xlu0 3
    %140 = vperm.xlu0 %139, %v38
    %v141 = vpop.permute.xlu0 %140
    %v143 = vmul.f32 %v137, %v141
    %v144 = vmul.f32 %v138, %v141
    %v145 = vadd.f32 %v128, %v143
    %v146 = vadd.f32 %v129, %v144
    %147 = vset.pattern.permute.xlu0 4
    %148 = vperm.xlu0 %147, %v38
    %v149 = vpop.permute.xlu0 %148
    %v151 = vmul.f32 %v36, %v149
    %v152 = vmul.f32 %v37, %v149
    %v153 = vadd.f32 %v145, %v151
    %v154 = vadd.f32 %v146, %v152
    %155 = vrot.lane.b32.xlu0 %v36, 127
    %v156 = vpop.permute.xlu0 %155
    %157 = vrot.lane.b32.xlu0 %v37, 127
    %v158 = vpop.permute.xlu0 %157
    %vm159 = vcmp.lt.s32.totalorder %v40, 127
    %v160 = vsel %vm159, %v156, %v158
    %v161 = vsel %vm159, %v158, %v156
    %v162 = vsel %vm72, %v160, 0.0
    %v163 = vsel %vm73, %v161, 0.0
    %164 = vset.pattern.permute.xlu0 5
    %165 = vperm.xlu0 %164, %v38
    %v166 = vpop.permute.xlu0 %165
    %v168 = vmul.f32 %v162, %v166
    %v169 = vmul.f32 %v163, %v166
    %v170 = vadd.f32 %v153, %v168
    %v171 = vadd.f32 %v154, %v169
    %172 = vrot.lane.b32.xlu0 %v36, 113
    %v173 = vpop.permute.xlu0 %172
    %174 = vrot.lane.b32.xlu0 %v37, 113
    %v175 = vpop.permute.xlu0 %174
    %vm176 = vcmp.lt.s32.totalorder %v40, 113
    %v177 = vsel %vm176, %v173, %v175
    %v178 = vsel %vm176, %v175, %v173
    %vm179 = vmand %vm68, %vm70
    %vm180 = vmand %vm69, %vm71
    %v181 = vsel %vm179, %v177, 0.0
    %v182 = vsel %vm180, %v178, 0.0
    %183 = vset.pattern.permute.xlu0 6
    %184 = vperm.xlu0 %183, %v38
    %v185 = vpop.permute.xlu0 %184
    %v187 = vmul.f32 %v181, %v185
    %v188 = vmul.f32 %v182, %v185
    %v189 = vadd.f32 %v170, %v187
    %v190 = vadd.f32 %v171, %v188
    %191 = vrot.lane.b32.xlu0 %v36, 112
    %v192 = vpop.permute.xlu0 %191
    %193 = vrot.lane.b32.xlu0 %v37, 112
    %v194 = vpop.permute.xlu0 %193
    %vm195 = vcmp.lt.s32.totalorder %v40, 112
    %v196 = vsel %vm195, %v192, %v194
    %v197 = vsel %vm195, %v194, %v192
    %v198 = vsel %vm68, %v196, 0.0
    %v199 = vsel %vm69, %v197, 0.0
    %200 = vset.pattern.permute.xlu0 7
    %201 = vperm.xlu0 %200, %v38
    %v202 = vpop.permute.xlu0 %201
    %v204 = vmul.f32 %v198, %v202
    %v205 = vmul.f32 %v199, %v202
    %v206 = vadd.f32 %v189, %v204
    %v207 = vadd.f32 %v190, %v205
    %208 = vrot.lane.b32.xlu0 %v36, 111
    %v209 = vpop.permute.xlu0 %208
    %210 = vrot.lane.b32.xlu0 %v37, 111
    %v211 = vpop.permute.xlu0 %210
    %vm212 = vcmp.lt.s32.totalorder %v40, 111
    %v213 = vsel %vm212, %v209, %v211
    %v214 = vsel %vm212, %v211, %v209
    %vm215 = vmand %vm68, %vm72
    %vm216 = vmand %vm69, %vm73
    %v217 = vsel %vm215, %v213, 0.0
    %v218 = vsel %vm216, %v214, 0.0
    %219 = vset.pattern.permute.xlu0 8
    %220 = vperm.xlu0 %219, %v38
    %v221 = vpop.permute.xlu0 %220
    %v223 = vmul.f32 %v217, %v221
    %v224 = vmul.f32 %v218, %v221
    %v225 = vadd.f32 %v206, %v223
    %v226 = vadd.f32 %v207, %v224
    %v229 = vrot.slane %v225, 2
    %v230 = vrot.slane %v226, 2
    %v233 = vadd.f32 %v225, %v229
    %v234 = vadd.f32 %v226, %v230
    %v235 = vrot.slane %v225, 4
    %v236 = vrot.slane %v226, 4
    %v239 = vadd.f32 %v233, %v235
    %v240 = vadd.f32 %v234, %v236
    %v241 = vrot.slane %v225, 6
    %v242 = vrot.slane %v226, 6
    %v245 = vadd.f32 %v239, %v241
    %v246 = vadd.f32 %v240, %v242
    %v249 = vcombine.low %v245, %v246
    %v251 = vunpack.c.l.s4 1983009808
    %v252 = vunpack.c.0.s8 %v251
    %v253 = vlaneseq
    %v254 = vshrl.u32 %v253, 7
    %v255 = vsub.s32 %v252, %v254
    %v256 = vrot.slane %v249, %v255
    %258 = vst [vmem:[#allocation7] sm:$0xf] %v256
    // Predicated region
    $region18: #{tpu_custom_call.1} parent=1 // pred_check
      _
    $region19: #{tpu_custom_call.1} parent=1 // pred_check_branch
      %260 = sbr.rel (0) target = $region21
    $region20: #{tpu_custom_call.1} parent=1 // pred_region
      %s262 = ssub.s32 64, 64
      %263 = vsyncadd [#allocation4], %s262
      %s265 = sshll.u32 [#allocation7], 4
      %s266 = int_to_ptr.vmem [resolvable:$true] %s265
      %268 = dma.vmem_to_hbm [thread:$0]  %s266, 64, %s2, [#allocation4]
    $region21: #{tpu_custom_call.1} parent=1 // pred_fallthru
      _
    // Predicated region
    $region22: #{tpu_custom_call.1} parent=1 // pred_check
      _
    $region23: #{tpu_custom_call.1} parent=1 // pred_check_branch
      %270 = sbr.rel (0) target = $region25
    $region24: #{tpu_custom_call.1} parent=1 // pred_region
      %271 = dma.done [#allocation4], 64
    $region25: #{tpu_custom_call.1} parent=1 // pred_fallthru
      _
    %272 = vsyncpa [#allocation3], 1
    %273 = vsyncpa [#allocation6], 1
    %274 = vsyncpa [#allocation4], 1

</llo_original>
